<compile_context>
chip_gen: v7x
topology: tpu7x:2x2x1
jax: 0.10.0
libtpu: 0.0.40
codegen_flags: <defaults>
</compile_context>

<pallas_src>
import jax
import jax.numpy as jnp
from jax.experimental import pallas as pl
from jax.experimental.pallas import tpu as pltpu


_VMEM = pl.BlockSpec(memory_space=pltpu.MemorySpace.VMEM)
_NEG = -1000000.0   # same fill value the PyTorch module uses for masked scores


# ----------------------------- Pallas kernel ------------------------------- #

def _fused_mha_kernel(q_ref, k_ref, v_ref, mask_ref,
                      wq_ref, bq_ref, ww_ref, bw_ref, w1_ref, b1_ref, w2_ref, b2_ref,
                      attn_ref, ctx_ref, proj_ref, logit_ref,
                      q_slab, q_rows):
    """Fused W_Q + masked SDPA + head logit + final projections for all B*H heads.

    q_ref    : [B, d_model]  f32      (decoder query, L_q == 1 squeezed by the wrapper)
    k_ref    : [R, Lk, Dh]   f32      R = B*H, b-major stacking (free reshape in glue)
    v_ref    : [R, Lk, Dh]   f32
    mask_ref : [R, Lk, 1]    f32      1.0 == masked (glue repeats the [B, Lk] mask over heads)
    wq_ref   : [d_model, H*P] bf16    P = Dh padded to a 128 multiple; scale folded in
    bq_ref   : [1, H*P]      f32      scale folded in
    ww_ref   : [1, Dh]  bw_ref: [1,1] linear_weight (head-selection logit)
    w1_ref   : [Dh, Dh] bf16, b1_ref: [1, Dh]        linear_final1
    w2_ref   : [Dh, d_model] bf16, b2_ref: [1, d_model]  linear_final2
    attn_ref : [R, Lk, 1]   ctx_ref: [R, Dh]   proj_ref: [R, d_model]   logit_ref: [R, 1]
    q_slab   : VMEM (B, H*P)   q_rows: VMEM (R, 1, Dh)   (tiny staging scratch)
    """
    B = q_ref.shape[0]
    R, Lk, Dh = k_ref.shape
    H = R // B
    P = wq_ref.shape[1] // H          # per-head lane stride (Dh padded to a 128 multiple)

    # ---- W_Q projection for ALL heads: one bf16 MXU matmul, f32 accumulation ----
    # (1/sqrt(Dh) score scale + per-head lane padding are folded into wq/bq by prepare_params.)
    q_slab[...] = (jnp.dot(q_ref[...].astype(jnp.bfloat16), wq_ref[...],
                           preferred_element_type=jnp.float32)
                   + bq_ref[...])                                      # [B, H*P]

    # Re-pack the projected query into one broadcast-ready row per (batch, head).
    # Staging through VMEM avoids in-register lane reshapes; head blocks sit at 128-aligned
    # lane offsets thanks to the padded wq layout.
    # TODO(synk): for large B*H move this (and the ctx stacking below) onto a grid axis or a
    # lax.fori_loop(unroll=True) so vreg live ranges stay bounded.
    for b in range(B):
        for h in range(H):
            q_rows[b * H + h, 0, :] = q_slab[b, pl.ds(h * P, Dh)]

    # ---- masked scaled-dot-product attention for all B*H heads on the VPU/XLU ----
    # Key axis stays on sublanes (keepdims everywhere): every broadcast is a unit-dim broadcast,
    # the exp runs on the EUP and the reductions on the XLU, leaving the MXU slot free.
    k = k_ref[...]                                                     # [R, Lk, Dh]
    v = v_ref[...]
    s = jnp.sum(q_rows[...] * k, axis=-1, keepdims=True)               # [R, Lk, 1]
    # Binary mask: identical to scores*(1-m) + m*(-1e6), one select instead of 2 mul + add.
    s = jnp.where(mask_ref[...] > 0.0, _NEG, s)
    smax = jnp.max(s, axis=1, keepdims=True)                           # [R, 1, 1]
    e = jnp.exp(s - smax)
    p = e * pl.reciprocal(jnp.sum(e, axis=1, keepdims=True), approx=True)   # [R, Lk, 1]
    attn_ref[...] = p

    ctx = jnp.sum(p * v, axis=1, keepdims=True)                        # [R, 1, Dh]  (f32 VPU)

    # Stack the context rows (b-major) in the ctx output ref; it doubles as staging so the final
    # projections run as ONE matmul over all B*H rows (project-then-select == select-then-project).
    for r in range(R):
        ctx_ref[r, :] = ctx[r, 0, :]
    ctx_all = ctx_ref[...]                                             # [R, Dh]

    # ---- head-selection logit (VPU lane reduce) + final projections (bf16 MXU) ----
    logit_ref[...] = (jnp.sum(ctx_all * ww_ref[...], axis=-1, keepdims=True)
                      + bw_ref[...])                                   # linear_weight(context)
    h1 = (jnp.dot(ctx_all.astype(jnp.bfloat16), w1_ref[...],
                  preferred_element_type=jnp.float32)
          + b1_ref[...])                                               # linear_final1
    proj_ref[...] = (jnp.dot(h1.astype(jnp.bfloat16), w2_ref[...],
                             preferred_element_type=jnp.float32)
                     + b2_ref[...])                                    # linear_final2


# ------------------------------ host wrappers ------------------------------ #

def prepare_params(params, n_heads):
    """One-time parameter preparation (hoisted out of the forward path).

    Folds the 1/sqrt(Dh) score scale into W_Q, zero-pads each head's W_Q block to a 128-lane
    stride (so in-kernel head slices are 128-aligned), and pre-casts all MXU weights to bf16.
    """
    d_model, hdh = params["wq"].shape
    Dh = hdh // n_heads
    scale = float(Dh) ** -0.5
    P = ((Dh + 127) // 128) * 128
    pad = P - Dh

    wq3 = (params["wq"] * scale).reshape(d_model, n_heads, Dh)
    wq_pad = jnp.pad(wq3, ((0, 0), (0, 0), (0, pad))).reshape(d_model, n_heads * P)
    bq3 = (params["bq"] * scale).reshape(1, n_heads, Dh)
    bq_pad = jnp.pad(bq3, ((0, 0), (0, 0), (0, pad))).reshape(1, n_heads * P)

    return {
        "wq": wq_pad.astype(jnp.bfloat16),
        "bq": bq_pad.astype(jnp.float32),
        "ww": params["w_weight"].astype(jnp.float32),      # [1, Dh]
        "bw": params["b_weight"].astype(jnp.float32),      # [1, 1]
        "w1": params["w1"].astype(jnp.bfloat16),
        "b1": params["b1"].astype(jnp.float32),
        "w2": params["w2"].astype(jnp.bfloat16),
        "b2": params["b2"].astype(jnp.float32),
        "n_heads": n_heads,
        "dim_per_head": Dh,
        "head_stride": P,
    }


def multi_head_attention_forward(prep, Q, K, V, mask, base_flag=True, rng=None):
    """Pallas re-implementation of MultiHeadAttention.forward.

    Q: [B, 1, d_model], K/V: [B, H, Lk, Dh], mask: [B, Lk] float32 (1.0 == masked).
    Returns (output, ret_attn, attn_list, context, mul_attn), matching the PyTorch module
    (dropout p=0.0 -> identity; layer_norm is defined but unused in forward).
    """
    B, Lq, d_model = Q.shape
    _, H, Lk, Dh = K.shape
    assert Lq == 1, "the module squeezes the L_q axis, so L_q must be 1"
    assert H == prep["n_heads"] and Dh == prep["dim_per_head"]
    R = B * H
    P = prep["head_stride"]

    q2d = Q.reshape(B, d_model)
    k_r = K.reshape(R, Lk, Dh)                       # free row-major collapse (b-major rows)
    v_r = V.reshape(R, Lk, Dh)
    mask_r = jnp.repeat(mask, H, axis=0)[:, :, None]  # [R, Lk, 1]; row b*H+h == mask[b]

    flops = (2 * B * d_model * H * P          # W_Q (incl. padded columns)
             + 4 * R * Lk * Dh                # scores + context
             + 2 * R * Dh                     # head-selection logit
             + 2 * R * Dh * Dh                # linear_final1
             + 2 * R * Dh * d_model)          # linear_final2
    bytes_accessed = (4 * (q2d.size + k_r.size + v_r.size + mask_r.size
                           + prep["bq"].size + prep["ww"].size + prep["bw"].size
                           + prep["b1"].size + prep["b2"].size
                           + R * Lk + R * Dh + R * d_model + R)
                      + 2 * (prep["wq"].size + prep["w1"].size + prep["w2"].size))
    cost = pl.CostEstimate(flops=flops, transcendentals=R * (Lk + 1),
                           bytes_accessed=bytes_accessed)

    attn_rk1, ctx_rd, proj_rd, logit_r1 = pl.pallas_call(
        _fused_mha_kernel,
        out_shape=(
            jax.ShapeDtypeStruct((R, Lk, 1), jnp.float32),
            jax.ShapeDtypeStruct((R, Dh), jnp.float32),
            jax.ShapeDtypeStruct((R, d_model), jnp.float32),
            jax.ShapeDtypeStruct((R, 1), jnp.float32),
        ),
        in_specs=[_VMEM] * 12,
        out_specs=(_VMEM, _VMEM, _VMEM, _VMEM),
        scratch_shapes=[
            pltpu.VMEM((B, H * P), jnp.float32),     # q_slab: projected query, all heads
            pltpu.VMEM((R, 1, Dh), jnp.float32),     # q_rows: broadcast-ready per-(b,h) rows
        ],
        cost_estimate=cost,
        # TODO(synk): at real sizes add a grid over B/H marked "parallel" (v7x: 2 TensorCores)
        # and tile K/V over Lk flash-style sized for 32 MiB (v7x) / 16 MiB (v5e) scoped VMEM;
        # also pad/merge the outputs into a lane-dense (x128) slab.
    )(q2d, k_r, v_r, mask_r, prep["wq"], prep["bq"], prep["ww"], prep["bw"],
      prep["w1"], prep["b1"], prep["w2"], prep["b2"])

    attn = attn_rk1.reshape(B, H, Lk)         # [B, H, Lk]  (attn.squeeze(2))
    context = ctx_rd.reshape(B, H, Dh)        # [B, H, Dh]  (context.squeeze(2))
    proj_all = proj_rd.reshape(B, H, d_model)
    logits = logit_r1.reshape(B, H)           # linear_weight(context).squeeze(2)

    if base_flag:
        select_head = jnp.argmax(logits, axis=1)       # argmax(softmax(x)) == argmax(x)
    else:
        # TODO(synk): torch.multinomial uses torch's RNG stream; a categorical draw on the raw
        # logits is the same distribution but not bit-wise reproducible vs. PyTorch.
        select_head = jax.random.categorical(rng, logits, axis=1)

    idx = select_head[:, None, None]
    # Projection is per-row linear, so project-all-then-select == select-then-project.
    output = jnp.take_along_axis(proj_all, idx, axis=1)[:, 0, :]      # [B, d_model]
    ret_attn = jnp.take_along_axis(attn, idx, axis=1)[:, 0, :]        # [B, Lk]
    # self.dropout has p = 0.0 -> identity; self.layer_norm is unused in forward.

    mul_attn = attn
    attn_list = [attn[:, h, :] for h in range(H)]
    return output, ret_attn, attn_list, context, mul_attn


def init_params(key, d_model, n_heads):
    """Deterministic synthetic parameters (shapes follow the module's __init__)."""
    Dh = d_model * 6 // n_heads
    ks = jax.random.split(key, 8)
    s = 0.05
    return {
        # W_Q: Linear(d_model, n_heads*Dh) stored as [in, out] for x @ W
        "wq": s * jax.random.normal(ks[0], (d_model, n_heads * Dh), jnp.float32),
        "bq": s * jax.random.normal(ks[1], (1, n_heads * Dh), jnp.float32),
        # linear_weight: Linear(Dh, 1)
        "w_weight": s * jax.random.normal(ks[2], (1, Dh), jnp.float32),
        "b_weight": s * jax.random.normal(ks[3], (1, 1), jnp.float32),
        # linear_final1: Linear(Dh, Dh)
        "w1": s * jax.random.normal(ks[4], (Dh, Dh), jnp.float32),
        "b1": s * jax.random.normal(ks[5], (1, Dh), jnp.float32),
        # linear_final2: Linear(Dh, d_model)
        "w2": s * jax.random.normal(ks[6], (Dh, d_model), jnp.float32),
        "b2": s * jax.random.normal(ks[7], (1, d_model), jnp.float32),
    }


if __name__ == "__main__":
    key = jax.random.PRNGKey(0)
    d_model, n_heads = 32, 4
    B, Lk = 2, 8
    Dh = d_model * 6 // n_heads   # 48

    kp, kq, kk, kv = jax.random.split(key, 4)
    params = init_params(kp, d_model, n_heads)
    prep = prepare_params(params, n_heads)     # hoisted: runs once, outside the forward path

    Q = jax.random.normal(kq, (B, 1, d_model), jnp.float32)
    K = jax.random.normal(kk, (B, n_heads, Lk, Dh), jnp.float32)
    V = jax.random.normal(kv, (B, n_heads, Lk, Dh), jnp.float32)
    mask = jnp.zeros((B, Lk), jnp.float32).at[0, Lk - 1].set(1.0)   # mask last key of batch 0

    out = multi_head_attention_forward(prep, Q, K, V, mask, base_flag=True)
    jax.block_until_ready(out)

    output, ret_attn, attn_list, context, mul_attn = out
    assert output.shape == (B, d_model)
    assert ret_attn.shape == (B, Lk)
    assert len(attn_list) == n_heads and attn_list[0].shape == (B, Lk)
    assert context.shape == (B, n_heads, Dh)
    assert mul_attn.shape == (B, n_heads, Lk)
    # masked key of batch 0 must carry ~zero attention mass in every head
    assert float(jnp.max(mul_attn[0, :, Lk - 1])) < 1e-3
    # attention rows sum to ~1 (approx reciprocal -> loose tolerance)
    assert abs(float(jnp.sum(mul_attn[1, 0, :])) - 1.0) < 1e-2
    assert bool(jnp.all(jnp.isfinite(output)))
    print("KERNEL_OK")
</pallas_src>

<mosaic_0001>
module attributes {stable_mosaic.version = 11 : i64} {
  func.func @_fused_mha_kernel(%arg0: memref<2x32xf32, #tpu.memory_space<vmem>>, %arg1: memref<8x8x48xf32, #tpu.memory_space<vmem>>, %arg2: memref<8x8x48xf32, #tpu.memory_space<vmem>>, %arg3: memref<8x8x1xf32, #tpu.memory_space<vmem>>, %arg4: memref<32x512xbf16, #tpu.memory_space<vmem>>, %arg5: memref<1x512xf32, #tpu.memory_space<vmem>>, %arg6: memref<1x48xf32, #tpu.memory_space<vmem>>, %arg7: memref<1x1xf32, #tpu.memory_space<vmem>>, %arg8: memref<48x48xbf16, #tpu.memory_space<vmem>>, %arg9: memref<1x48xf32, #tpu.memory_space<vmem>>, %arg10: memref<48x32xbf16, #tpu.memory_space<vmem>>, %arg11: memref<1x32xf32, #tpu.memory_space<vmem>>, %arg12: memref<8x8x1xf32, #tpu.memory_space<vmem>>, %arg13: memref<8x48xf32, #tpu.memory_space<vmem>>, %arg14: memref<8x32xf32, #tpu.memory_space<vmem>>, %arg15: memref<8x1xf32, #tpu.memory_space<vmem>>, %arg16: memref<2x512xf32, #tpu.memory_space<vmem>>, %arg17: memref<8x1x48xf32, #tpu.memory_space<vmem>>) attributes {dimension_semantics = [], scalar_prefetch = 0 : i64, scratch_operands = 2 : i64, tpu.core_type = #tpu.core_type<tc>} {
    %c0 = arith.constant 0 : index
    %c0_0 = arith.constant 0 : index
    %0 = vector.load %arg0[%c0, %c0_0] : memref<2x32xf32, #tpu.memory_space<vmem>>, vector<2x32xf32>
    %1 = arith.truncf %0 : vector<2x32xf32> to vector<2x32xbf16>
    %c0_1 = arith.constant 0 : index
    %c0_2 = arith.constant 0 : index
    %2 = vector.load %arg4[%c0_1, %c0_2] : memref<32x512xbf16, #tpu.memory_space<vmem>>, vector<32x512xbf16>
    %cst = arith.constant dense<0.000000e+00> : vector<2x512xf32>
    %3 = tpu.matmul %1, %2, %cst {dimension_numbers = #tpu.dot_dimension_numbers<[1], [0], [0], [1], [0, 0, 1, 1], [], []>} : vector<2x32xbf16>, vector<32x512xbf16>, vector<2x512xf32> -> vector<2x512xf32>
    %c0_3 = arith.constant 0 : index
    %c0_4 = arith.constant 0 : index
    %4 = vector.load %arg5[%c0_3, %c0_4] : memref<1x512xf32, #tpu.memory_space<vmem>>, vector<1x512xf32>
    %5 = vector.broadcast %4 : vector<1x512xf32> to vector<2x512xf32>
    %6 = arith.addf %3, %5 : vector<2x512xf32>
    %c0_5 = arith.constant 0 : index
    %c0_6 = arith.constant 0 : index
    %7 = vector.load %arg16[%c0_5, %c0_6] : memref<2x512xf32, #tpu.memory_space<vmem>>, vector<2x512xf32>
    tpu.vector_store %arg16[%c0_5, %c0_6], %6 {strides = array<i32>} : memref<2x512xf32, #tpu.memory_space<vmem>>, vector<2x512xf32>,
    %c0_7 = arith.constant 0 : index
    %c0_8 = arith.constant 0 : index
    %8 = vector.load %arg16[%c0_7, %c0_8] : memref<2x512xf32, #tpu.memory_space<vmem>>, vector<1x48xf32>
    %9 = vector.shape_cast %8 : vector<1x48xf32> to vector<48xf32>
    %c0_9 = arith.constant 0 : index
    %c0_10 = arith.constant 0 : index
    %c0_11 = arith.constant 0 : index
    %10 = vector.load %arg17[%c0_9, %c0_10, %c0_11] : memref<8x1x48xf32, #tpu.memory_space<vmem>>, vector<1x1x48xf32>
    %11 = vector.shape_cast %10 : vector<1x1x48xf32> to vector<48xf32>
    %12 = vector.shape_cast %9 : vector<48xf32> to vector<1x1x48xf32>
    tpu.vector_store %arg17[%c0_9, %c0_10, %c0_11], %12 {strides = array<i32>} : memref<8x1x48xf32, #tpu.memory_space<vmem>>, vector<1x1x48xf32>,
    %c0_12 = arith.constant 0 : index
    %c128 = arith.constant 128 : index
    %13 = vector.load %arg16[%c0_12, %c128] : memref<2x512xf32, #tpu.memory_space<vmem>>, vector<1x48xf32>
    %14 = vector.shape_cast %13 : vector<1x48xf32> to vector<48xf32>
    %c1 = arith.constant 1 : index
    %c0_13 = arith.constant 0 : index
    %c0_14 = arith.constant 0 : index
    %15 = vector.load %arg17[%c1, %c0_13, %c0_14] : memref<8x1x48xf32, #tpu.memory_space<vmem>>, vector<1x1x48xf32>
    %16 = vector.shape_cast %15 : vector<1x1x48xf32> to vector<48xf32>
    %17 = vector.shape_cast %14 : vector<48xf32> to vector<1x1x48xf32>
    tpu.vector_store %arg17[%c1, %c0_13, %c0_14], %17 {strides = array<i32>} : memref<8x1x48xf32, #tpu.memory_space<vmem>>, vector<1x1x48xf32>,
    %c0_15 = arith.constant 0 : index
    %c256 = arith.constant 256 : index
    %18 = vector.load %arg16[%c0_15, %c256] : memref<2x512xf32, #tpu.memory_space<vmem>>, vector<1x48xf32>
    %19 = vector.shape_cast %18 : vector<1x48xf32> to vector<48xf32>
    %c2 = arith.constant 2 : index
    %c0_16 = arith.constant 0 : index
    %c0_17 = arith.constant 0 : index
    %20 = vector.load %arg17[%c2, %c0_16, %c0_17] : memref<8x1x48xf32, #tpu.memory_space<vmem>>, vector<1x1x48xf32>
    %21 = vector.shape_cast %20 : vector<1x1x48xf32> to vector<48xf32>
    %22 = vector.shape_cast %19 : vector<48xf32> to vector<1x1x48xf32>
    tpu.vector_store %arg17[%c2, %c0_16, %c0_17], %22 {strides = array<i32>} : memref<8x1x48xf32, #tpu.memory_space<vmem>>, vector<1x1x48xf32>,
    %c0_18 = arith.constant 0 : index
    %c384 = arith.constant 384 : index
    %23 = vector.load %arg16[%c0_18, %c384] : memref<2x512xf32, #tpu.memory_space<vmem>>, vector<1x48xf32>
    %24 = vector.shape_cast %23 : vector<1x48xf32> to vector<48xf32>
    %c3 = arith.constant 3 : index
    %c0_19 = arith.constant 0 : index
    %c0_20 = arith.constant 0 : index
    %25 = vector.load %arg17[%c3, %c0_19, %c0_20] : memref<8x1x48xf32, #tpu.memory_space<vmem>>, vector<1x1x48xf32>
    %26 = vector.shape_cast %25 : vector<1x1x48xf32> to vector<48xf32>
    %27 = vector.shape_cast %24 : vector<48xf32> to vector<1x1x48xf32>
    tpu.vector_store %arg17[%c3, %c0_19, %c0_20], %27 {strides = array<i32>} : memref<8x1x48xf32, #tpu.memory_space<vmem>>, vector<1x1x48xf32>,
    %c1_21 = arith.constant 1 : index
    %c0_22 = arith.constant 0 : index
    %28 = vector.load %arg16[%c1_21, %c0_22] : memref<2x512xf32, #tpu.memory_space<vmem>>, vector<1x48xf32>
    %29 = vector.shape_cast %28 : vector<1x48xf32> to vector<48xf32>
    %c4 = arith.constant 4 : index
    %c0_23 = arith.constant 0 : index
    %c0_24 = arith.constant 0 : index
    %30 = vector.load %arg17[%c4, %c0_23, %c0_24] : memref<8x1x48xf32, #tpu.memory_space<vmem>>, vector<1x1x48xf32>
    %31 = vector.shape_cast %30 : vector<1x1x48xf32> to vector<48xf32>
    %32 = vector.shape_cast %29 : vector<48xf32> to vector<1x1x48xf32>
    tpu.vector_store %arg17[%c4, %c0_23, %c0_24], %32 {strides = array<i32>} : memref<8x1x48xf32, #tpu.memory_space<vmem>>, vector<1x1x48xf32>,
    %c1_25 = arith.constant 1 : index
    %c128_26 = arith.constant 128 : index
    %33 = vector.load %arg16[%c1_25, %c128_26] : memref<2x512xf32, #tpu.memory_space<vmem>>, vector<1x48xf32>
    %34 = vector.shape_cast %33 : vector<1x48xf32> to vector<48xf32>
    %c5 = arith.constant 5 : index
    %c0_27 = arith.constant 0 : index
    %c0_28 = arith.constant 0 : index
    %35 = vector.load %arg17[%c5, %c0_27, %c0_28] : memref<8x1x48xf32, #tpu.memory_space<vmem>>, vector<1x1x48xf32>
    %36 = vector.shape_cast %35 : vector<1x1x48xf32> to vector<48xf32>
    %37 = vector.shape_cast %34 : vector<48xf32> to vector<1x1x48xf32>
    tpu.vector_store %arg17[%c5, %c0_27, %c0_28], %37 {strides = array<i32>} : memref<8x1x48xf32, #tpu.memory_space<vmem>>, vector<1x1x48xf32>,
    %c1_29 = arith.constant 1 : index
    %c256_30 = arith.constant 256 : index
    %38 = vector.load %arg16[%c1_29, %c256_30] : memref<2x512xf32, #tpu.memory_space<vmem>>, vector<1x48xf32>
    %39 = vector.shape_cast %38 : vector<1x48xf32> to vector<48xf32>
    %c6 = arith.constant 6 : index
    %c0_31 = arith.constant 0 : index
    %c0_32 = arith.constant 0 : index
    %40 = vector.load %arg17[%c6, %c0_31, %c0_32] : memref<8x1x48xf32, #tpu.memory_space<vmem>>, vector<1x1x48xf32>
    %41 = vector.shape_cast %40 : vector<1x1x48xf32> to vector<48xf32>
    %42 = vector.shape_cast %39 : vector<48xf32> to vector<1x1x48xf32>
    tpu.vector_store %arg17[%c6, %c0_31, %c0_32], %42 {strides = array<i32>} : memref<8x1x48xf32, #tpu.memory_space<vmem>>, vector<1x1x48xf32>,
    %c1_33 = arith.constant 1 : index
    %c384_34 = arith.constant 384 : index
    %43 = vector.load %arg16[%c1_33, %c384_34] : memref<2x512xf32, #tpu.memory_space<vmem>>, vector<1x48xf32>
    %44 = vector.shape_cast %43 : vector<1x48xf32> to vector<48xf32>
    %c7 = arith.constant 7 : index
    %c0_35 = arith.constant 0 : index
    %c0_36 = arith.constant 0 : index
    %45 = vector.load %arg17[%c7, %c0_35, %c0_36] : memref<8x1x48xf32, #tpu.memory_space<vmem>>, vector<1x1x48xf32>
    %46 = vector.shape_cast %45 : vector<1x1x48xf32> to vector<48xf32>
    %47 = vector.shape_cast %44 : vector<48xf32> to vector<1x1x48xf32>
    tpu.vector_store %arg17[%c7, %c0_35, %c0_36], %47 {strides = array<i32>} : memref<8x1x48xf32, #tpu.memory_space<vmem>>, vector<1x1x48xf32>,
    %c0_37 = arith.constant 0 : index
    %c0_38 = arith.constant 0 : index
    %c0_39 = arith.constant 0 : index
    %48 = vector.load %arg1[%c0_37, %c0_38, %c0_39] : memref<8x8x48xf32, #tpu.memory_space<vmem>>, vector<8x8x48xf32>
    %c0_40 = arith.constant 0 : index
    %c0_41 = arith.constant 0 : index
    %c0_42 = arith.constant 0 : index
    %49 = vector.load %arg2[%c0_40, %c0_41, %c0_42] : memref<8x8x48xf32, #tpu.memory_space<vmem>>, vector<8x8x48xf32>
    %c0_43 = arith.constant 0 : index
    %c0_44 = arith.constant 0 : index
    %c0_45 = arith.constant 0 : index
    %50 = vector.load %arg17[%c0_43, %c0_44, %c0_45] : memref<8x1x48xf32, #tpu.memory_space<vmem>>, vector<8x1x48xf32>
    %51 = vector.broadcast %50 : vector<8x1x48xf32> to vector<8x8x48xf32>
    %52 = arith.mulf %51, %48 : vector<8x8x48xf32>
    %cst_46 = arith.constant dense<0.000000e+00> : vector<8x8xf32>
    %53 = vector.multi_reduction <add>, %52, %cst_46 [2] : vector<8x8x48xf32> to vector<8x8xf32>
    %54 = vector.shape_cast %53 : vector<8x8xf32> to vector<8x8x1xf32>
    %c0_47 = arith.constant 0 : index
    %c0_48 = arith.constant 0 : index
    %c0_49 = arith.constant 0 : index
    %55 = vector.load %arg3[%c0_47, %c0_48, %c0_49] : memref<8x8x1xf32, #tpu.memory_space<vmem>>, vector<8x8x1xf32>
    %cst_50 = arith.constant 0.000000e+00 : f32
    %56 = vector.broadcast %cst_50 : f32 to vector<8x8x1xf32>
    %57 = arith.cmpf ogt, %55, %56 : vector<8x8x1xf32>
    %cst_51 = arith.constant -1.000000e+06 : f32
    %58 = vector.broadcast %cst_51 : f32 to vector<8x8x1xf32>
    %59 = arith.select %57, %58, %54 : vector<8x8x1xi1>, vector<8x8x1xf32>
    %cst_52 = arith.constant dense<0xFF800000> : vector<8x1xf32>
    %60 = vector.multi_reduction <maximumf>, %59, %cst_52 [1] : vector<8x8x1xf32> to vector<8x1xf32>
    %61 = vector.shape_cast %60 : vector<8x1xf32> to vector<8x1x1xf32>
    %62 = vector.broadcast %61 : vector<8x1x1xf32> to vector<8x8x1xf32>
    %63 = arith.subf %59, %62 : vector<8x8x1xf32>
    %64 = math.exp %63 : vector<8x8x1xf32>
    %cst_53 = arith.constant dense<0.000000e+00> : vector<8x1xf32>
    %65 = vector.multi_reduction <add>, %64, %cst_53 [1] : vector<8x8x1xf32> to vector<8x1xf32>
    %66 = vector.shape_cast %65 : vector<8x1xf32> to vector<8x1x1xf32>
    %67 = tpu.reciprocal %66 {approx = true} : vector<8x1x1xf32> -> vector<8x1x1xf32>
    %68 = vector.broadcast %67 : vector<8x1x1xf32> to vector<8x8x1xf32>
    %69 = arith.mulf %64, %68 : vector<8x8x1xf32>
    %c0_54 = arith.constant 0 : index
    %c0_55 = arith.constant 0 : index
    %c0_56 = arith.constant 0 : index
    %70 = vector.load %arg12[%c0_54, %c0_55, %c0_56] : memref<8x8x1xf32, #tpu.memory_space<vmem>>, vector<8x8x1xf32>
    tpu.vector_store %arg12[%c0_54, %c0_55, %c0_56], %69 {strides = array<i32>} : memref<8x8x1xf32, #tpu.memory_space<vmem>>, vector<8x8x1xf32>,
    %71 = vector.broadcast %69 : vector<8x8x1xf32> to vector<8x8x48xf32>
    %72 = arith.mulf %71, %49 : vector<8x8x48xf32>
    %cst_57 = arith.constant dense<0.000000e+00> : vector<8x48xf32>
    %73 = vector.multi_reduction <add>, %72, %cst_57 [1] : vector<8x8x48xf32> to vector<8x48xf32>
    %74 = vector.shape_cast %73 : vector<8x48xf32> to vector<8x1x48xf32>
    %75 = vector.extract_strided_slice %74 {offsets = [0, 0, 0], sizes = [1, 1, 48], strides = [1, 1, 1]} : vector<8x1x48xf32> to vector<1x1x48xf32>
    %76 = vector.shape_cast %75 : vector<1x1x48xf32> to vector<48xf32>
    %c0_58 = arith.constant 0 : index
    %c0_59 = arith.constant 0 : index
    %77 = vector.load %arg13[%c0_58, %c0_59] : memref<8x48xf32, #tpu.memory_space<vmem>>, vector<1x48xf32>
    %78 = vector.shape_cast %77 : vector<1x48xf32> to vector<48xf32>
    %79 = vector.shape_cast %76 : vector<48xf32> to vector<1x48xf32>
    tpu.vector_store %arg13[%c0_58, %c0_59], %79 {strides = array<i32>} : memref<8x48xf32, #tpu.memory_space<vmem>>, vector<1x48xf32>,
    %80 = vector.extract_strided_slice %74 {offsets = [1, 0, 0], sizes = [1, 1, 48], strides = [1, 1, 1]} : vector<8x1x48xf32> to vector<1x1x48xf32>
    %81 = vector.shape_cast %80 : vector<1x1x48xf32> to vector<48xf32>
    %c1_60 = arith.constant 1 : index
    %c0_61 = arith.constant 0 : index
    %82 = vector.load %arg13[%c1_60, %c0_61] : memref<8x48xf32, #tpu.memory_space<vmem>>, vector<1x48xf32>
    %83 = vector.shape_cast %82 : vector<1x48xf32> to vector<48xf32>
    %84 = vector.shape_cast %81 : vector<48xf32> to vector<1x48xf32>
    tpu.vector_store %arg13[%c1_60, %c0_61], %84 {strides = array<i32>} : memref<8x48xf32, #tpu.memory_space<vmem>>, vector<1x48xf32>,
    %85 = vector.extract_strided_slice %74 {offsets = [2, 0, 0], sizes = [1, 1, 48], strides = [1, 1, 1]} : vector<8x1x48xf32> to vector<1x1x48xf32>
    %86 = vector.shape_cast %85 : vector<1x1x48xf32> to vector<48xf32>
    %c2_62 = arith.constant 2 : index
    %c0_63 = arith.constant 0 : index
    %87 = vector.load %arg13[%c2_62, %c0_63] : memref<8x48xf32, #tpu.memory_space<vmem>>, vector<1x48xf32>
    %88 = vector.shape_cast %87 : vector<1x48xf32> to vector<48xf32>
    %89 = vector.shape_cast %86 : vector<48xf32> to vector<1x48xf32>
    tpu.vector_store %arg13[%c2_62, %c0_63], %89 {strides = array<i32>} : memref<8x48xf32, #tpu.memory_space<vmem>>, vector<1x48xf32>,
    %90 = vector.extract_strided_slice %74 {offsets = [3, 0, 0], sizes = [1, 1, 48], strides = [1, 1, 1]} : vector<8x1x48xf32> to vector<1x1x48xf32>
    %91 = vector.shape_cast %90 : vector<1x1x48xf32> to vector<48xf32>
    %c3_64 = arith.constant 3 : index
    %c0_65 = arith.constant 0 : index
    %92 = vector.load %arg13[%c3_64, %c0_65] : memref<8x48xf32, #tpu.memory_space<vmem>>, vector<1x48xf32>
    %93 = vector.shape_cast %92 : vector<1x48xf32> to vector<48xf32>
    %94 = vector.shape_cast %91 : vector<48xf32> to vector<1x48xf32>
    tpu.vector_store %arg13[%c3_64, %c0_65], %94 {strides = array<i32>} : memref<8x48xf32, #tpu.memory_space<vmem>>, vector<1x48xf32>,
    %95 = vector.extract_strided_slice %74 {offsets = [4, 0, 0], sizes = [1, 1, 48], strides = [1, 1, 1]} : vector<8x1x48xf32> to vector<1x1x48xf32>
    %96 = vector.shape_cast %95 : vector<1x1x48xf32> to vector<48xf32>
    %c4_66 = arith.constant 4 : index
    %c0_67 = arith.constant 0 : index
    %97 = vector.load %arg13[%c4_66, %c0_67] : memref<8x48xf32, #tpu.memory_space<vmem>>, vector<1x48xf32>
    %98 = vector.shape_cast %97 : vector<1x48xf32> to vector<48xf32>
    %99 = vector.shape_cast %96 : vector<48xf32> to vector<1x48xf32>
    tpu.vector_store %arg13[%c4_66, %c0_67], %99 {strides = array<i32>} : memref<8x48xf32, #tpu.memory_space<vmem>>, vector<1x48xf32>,
    %100 = vector.extract_strided_slice %74 {offsets = [5, 0, 0], sizes = [1, 1, 48], strides = [1, 1, 1]} : vector<8x1x48xf32> to vector<1x1x48xf32>
    %101 = vector.shape_cast %100 : vector<1x1x48xf32> to vector<48xf32>
    %c5_68 = arith.constant 5 : index
    %c0_69 = arith.constant 0 : index
    %102 = vector.load %arg13[%c5_68, %c0_69] : memref<8x48xf32, #tpu.memory_space<vmem>>, vector<1x48xf32>
    %103 = vector.shape_cast %102 : vector<1x48xf32> to vector<48xf32>
    %104 = vector.shape_cast %101 : vector<48xf32> to vector<1x48xf32>
    tpu.vector_store %arg13[%c5_68, %c0_69], %104 {strides = array<i32>} : memref<8x48xf32, #tpu.memory_space<vmem>>, vector<1x48xf32>,
    %105 = vector.extract_strided_slice %74 {offsets = [6, 0, 0], sizes = [1, 1, 48], strides = [1, 1, 1]} : vector<8x1x48xf32> to vector<1x1x48xf32>
    %106 = vector.shape_cast %105 : vector<1x1x48xf32> to vector<48xf32>
    %c6_70 = arith.constant 6 : index
    %c0_71 = arith.constant 0 : index
    %107 = vector.load %arg13[%c6_70, %c0_71] : memref<8x48xf32, #tpu.memory_space<vmem>>, vector<1x48xf32>
    %108 = vector.shape_cast %107 : vector<1x48xf32> to vector<48xf32>
    %109 = vector.shape_cast %106 : vector<48xf32> to vector<1x48xf32>
    tpu.vector_store %arg13[%c6_70, %c0_71], %109 {strides = array<i32>} : memref<8x48xf32, #tpu.memory_space<vmem>>, vector<1x48xf32>,
    %110 = vector.extract_strided_slice %74 {offsets = [7, 0, 0], sizes = [1, 1, 48], strides = [1, 1, 1]} : vector<8x1x48xf32> to vector<1x1x48xf32>
    %111 = vector.shape_cast %110 : vector<1x1x48xf32> to vector<48xf32>
    %c7_72 = arith.constant 7 : index
    %c0_73 = arith.constant 0 : index
    %112 = vector.load %arg13[%c7_72, %c0_73] : memref<8x48xf32, #tpu.memory_space<vmem>>, vector<1x48xf32>
    %113 = vector.shape_cast %112 : vector<1x48xf32> to vector<48xf32>
    %114 = vector.shape_cast %111 : vector<48xf32> to vector<1x48xf32>
    tpu.vector_store %arg13[%c7_72, %c0_73], %114 {strides = array<i32>} : memref<8x48xf32, #tpu.memory_space<vmem>>, vector<1x48xf32>,
    %c0_74 = arith.constant 0 : index
    %c0_75 = arith.constant 0 : index
    %115 = vector.load %arg13[%c0_74, %c0_75] : memref<8x48xf32, #tpu.memory_space<vmem>>, vector<8x48xf32>
    %c0_76 = arith.constant 0 : index
    %c0_77 = arith.constant 0 : index
    %116 = vector.load %arg6[%c0_76, %c0_77] : memref<1x48xf32, #tpu.memory_space<vmem>>, vector<1x48xf32>
    %117 = vector.broadcast %116 : vector<1x48xf32> to vector<8x48xf32>
    %118 = arith.mulf %115, %117 : vector<8x48xf32>
    %cst_78 = arith.constant dense<0.000000e+00> : vector<8xf32>
    %119 = vector.multi_reduction <add>, %118, %cst_78 [1] : vector<8x48xf32> to vector<8xf32>
    %120 = vector.shape_cast %119 : vector<8xf32> to vector<8x1xf32>
    %c0_79 = arith.constant 0 : index
    %c0_80 = arith.constant 0 : index
    %121 = vector.load %arg7[%c0_79, %c0_80] : memref<1x1xf32, #tpu.memory_space<vmem>>, vector<1x1xf32>
    %122 = vector.broadcast %121 : vector<1x1xf32> to vector<8x1xf32>
    %123 = arith.addf %120, %122 : vector<8x1xf32>
    %c0_81 = arith.constant 0 : index
    %c0_82 = arith.constant 0 : index
    %124 = vector.load %arg15[%c0_81, %c0_82] : memref<8x1xf32, #tpu.memory_space<vmem>>, vector<8x1xf32>
    tpu.vector_store %arg15[%c0_81, %c0_82], %123 {strides = array<i32>} : memref<8x1xf32, #tpu.memory_space<vmem>>, vector<8x1xf32>,
    %125 = arith.truncf %115 : vector<8x48xf32> to vector<8x48xbf16>
    %c0_83 = arith.constant 0 : index
    %c0_84 = arith.constant 0 : index
    %126 = vector.load %arg8[%c0_83, %c0_84] : memref<48x48xbf16, #tpu.memory_space<vmem>>, vector<48x48xbf16>
    %cst_85 = arith.constant dense<0.000000e+00> : vector<8x48xf32>
    %127 = tpu.matmul %125, %126, %cst_85 {dimension_numbers = #tpu.dot_dimension_numbers<[1], [0], [0], [1], [0, 0, 1, 1], [], []>} : vector<8x48xbf16>, vector<48x48xbf16>, vector<8x48xf32> -> vector<8x48xf32>
    %c0_86 = arith.constant 0 : index
    %c0_87 = arith.constant 0 : index
    %128 = vector.load %arg9[%c0_86, %c0_87] : memref<1x48xf32, #tpu.memory_space<vmem>>, vector<1x48xf32>
    %129 = vector.broadcast %128 : vector<1x48xf32> to vector<8x48xf32>
    %130 = arith.addf %127, %129 : vector<8x48xf32>
    %131 = arith.truncf %130 : vector<8x48xf32> to vector<8x48xbf16>
    %c0_88 = arith.constant 0 : index
    %c0_89 = arith.constant 0 : index
    %132 = vector.load %arg10[%c0_88, %c0_89] : memref<48x32xbf16, #tpu.memory_space<vmem>>, vector<48x32xbf16>
    %cst_90 = arith.constant dense<0.000000e+00> : vector<8x32xf32>
    %133 = tpu.matmul %131, %132, %cst_90 {dimension_numbers = #tpu.dot_dimension_numbers<[1], [0], [0], [1], [0, 0, 1, 1], [], []>} : vector<8x48xbf16>, vector<48x32xbf16>, vector<8x32xf32> -> vector<8x32xf32>
    %c0_91 = arith.constant 0 : index
    %c0_92 = arith.constant 0 : index
    %134 = vector.load %arg11[%c0_91, %c0_92] : memref<1x32xf32, #tpu.memory_space<vmem>>, vector<1x32xf32>
    %135 = vector.broadcast %134 : vector<1x32xf32> to vector<8x32xf32>
    %136 = arith.addf %133, %135 : vector<8x32xf32>
    %c0_93 = arith.constant 0 : index
    %c0_94 = arith.constant 0 : index
    %137 = vector.load %arg14[%c0_93, %c0_94] : memref<8x32xf32, #tpu.memory_space<vmem>>, vector<8x32xf32>
    tpu.vector_store %arg14[%c0_93, %c0_94], %136 {strides = array<i32>} : memref<8x32xf32, #tpu.memory_space<vmem>>, vector<8x32xf32>,
    return
  }
}

</mosaic_0001>

<llo_original>
// kernel: tpu_custom_call.1
$region0: #{tpu_custom_call.1}
  #allocation0 [shape = 'u32[]', space=smem, size = 0x4, offset = 0x4, fixed_abs, tag = 'smem constant byte address 0x4 - core index']
  #allocation1 [shape = 'u32[144,128]{1,0:T(1,128)}', space=vmem, size = 0x12000, scoped, tag = 'internal scratch']
  #allocation2 [shape = 'f32[2,512]{1,0:T(2,128)}', space=vmem, size = 0x1000, scoped, tag = 'scratch operand']
  #allocation3 [shape = 'f32[8,1,48]{2,1,0:T(1,128)}', space=vmem, size = 0x1000, scoped, tag = 'scratch operand']
  #allocation4 [shape = 'f32[1,1]{1,0:T(1,128)S(1)}', space=vmem, size = 0x200, scoped, tag = 'scoped memory for tpu_custom_call.1']
  %s0 = inlined_call_operand.vmem [shape: f32[2,32], index: 0, kind: input, shape index: {}]
  %s1 = inlined_call_operand.vmem [shape: f32[8,8,48], index: 1, kind: input, shape index: {}]
  %s2 = inlined_call_operand.hbm [shape: f32[8,8,48], index: 2, kind: input, shape index: {}]
  %s3 = inlined_call_operand.vmem [shape: f32[8,8,1], index: 3, kind: input, shape index: {}]
  %s4 = inlined_call_operand.vmem [shape: bf16[32,512], index: 4, kind: input, shape index: {}]
  %s5 = inlined_call_operand.hbm [shape: f32[1,512], index: 5, kind: input, shape index: {}]
  %s6 = inlined_call_operand.hbm [shape: f32[1,48], index: 6, kind: input, shape index: {}]
  %s7 = inlined_call_operand.<no memory space> [shape: f32[1,1], index: 7, kind: input, shape index: {}]
  %s8 = inlined_call_operand.hbm [shape: bf16[48,48], index: 8, kind: input, shape index: {}]
  %s9 = inlined_call_operand.hbm [shape: f32[1,48], index: 9, kind: input, shape index: {}]
  %s10 = inlined_call_operand.vmem [shape: bf16[48,32], index: 10, kind: input, shape index: {}]
  %s11 = inlined_call_operand.vmem [shape: f32[1,32], index: 11, kind: input, shape index: {}]
  %s12 = inlined_call_operand.vmem [shape: f32[8,8,1], index: 12, kind: output, shape index: {0}]
  %s13 = inlined_call_operand.hbm [shape: f32[8,48], index: 13, kind: output, shape index: {1}]
  %s14 = inlined_call_operand.hbm [shape: f32[8,32], index: 14, kind: output, shape index: {2}]
  %s15 = inlined_call_operand.vmem [shape: f32[8,1], index: 15, kind: output, shape index: {3}]
  %16 = xla_tuple %s12, %s13, %s14, %s15
  %s17 = sld [smem:[#allocation0]]
  $region102: #{tpu_custom_call.1} parent=0
    _
  %s19 = ssub.s32 1, %s17
  %s20 = scalar_select 0, %s19, %s17
  %v21 = vstv %s7
  %22 = vst [vmem:[#allocation4] sm:$0x1] %v21
  $region1: #{tpu_custom_call.1} parent=0
    #allocation5 [shape = 'u8[32768]{0}', space=vmem, size = 0x8000, scoped, tag = 'input window, operand 2, single buffered']
    #allocation6 [shape = 's32[1]{0}', space=sflag, size = 0x4, scoped, tag = 'scoped memory for tpu_custom_call.1']
    #allocation7 [shape = 's32[1]{0}', space=sflag, size = 0x4, scoped, tag = 'scoped memory for tpu_custom_call.1']
    #allocation8 [shape = 'u8[2048]{0}', space=vmem, size = 0x800, scoped, tag = 'input window, operand 5, single buffered']
    #allocation9 [shape = 's32[1]{0}', space=sflag, size = 0x4, scoped, tag = 'scoped memory for tpu_custom_call.1']
    #allocation10 [shape = 'u8[512]{0}', space=vmem, size = 0x400, scoped, tag = 'input window, operand 6, single buffered']
    #allocation11 [shape = 'u8[12288]{0}', space=vmem, size = 0x3000, scoped, tag = 'input window, operand 8, single buffered']
    #allocation12 [shape = 's32[1]{0}', space=sflag, size = 0x4, scoped, tag = 'scoped memory for tpu_custom_call.1']
    #allocation13 [shape = 'u8[512]{0}', space=vmem, size = 0x400, scoped, tag = 'input window, operand 9, single buffered']
    #allocation14 [shape = 'u8[4096]{0}', space=vmem, size = 0x1000, scoped, tag = 'output window, operand 1, single buffered']
    #allocation15 [shape = 'u8[4096]{0}', space=vmem, size = 0x1000, scoped, tag = 'output window, operand 2, single buffered']
    #allocation16 [shape = 's32[1]{0}', space=sflag, size = 0x4, scoped, tag = 'scoped memory for tpu_custom_call.1']
    %23 = vsyncpa [#allocation6], 0
    %24 = vsyncpa [#allocation9], 0
    %25 = vsyncpa [#allocation12], 0
    %26 = vsyncpa [#allocation7], 0
    %27 = vsyncpa [#allocation16], 0
    // Predicated region
    $region2: #{tpu_custom_call.1} parent=1 // pred_check
      _
    $region3: #{tpu_custom_call.1} parent=1 // pred_check_branch
      %29 = sbr.rel (0) target = $region5
    $region4: #{tpu_custom_call.1} parent=1 // pred_region
      _
    $region5: #{tpu_custom_call.1} parent=1 // pred_fallthru
      _
    // Predicated region
    $region6: #{tpu_custom_call.1} parent=1 // pred_check
      _
    $region7: #{tpu_custom_call.1} parent=1 // pred_check_branch
      %31 = sbr.rel (0) target = $region9
    $region8: #{tpu_custom_call.1} parent=1 // pred_region
      _
    $region9: #{tpu_custom_call.1} parent=1 // pred_fallthru
      _
    // Predicated region
    $region10: #{tpu_custom_call.1} parent=1 // pred_check
      _
    $region11: #{tpu_custom_call.1} parent=1 // pred_check_branch
      %33 = sbr.rel (0) target = $region13
    $region12: #{tpu_custom_call.1} parent=1 // pred_region
      %s35 = ssub.s32 1024, 1024
      %36 = vsyncadd [#allocation6], %s35
      %s37 = sshll.u32 [#allocation5], 4
      %s38 = int_to_ptr.vmem [resolvable:$true] %s37
      %43 = dma.hbm_to_vmem [thread:$0]  %s2, 1024, %s38, [#allocation6], 128, 128, 8
    $region13: #{tpu_custom_call.1} parent=1 // pred_fallthru
      _
    // Predicated region
    $region14: #{tpu_custom_call.1} parent=1 // pred_check
      _
    $region15: #{tpu_custom_call.1} parent=1 // pred_check_branch
      %45 = sbr.rel (0) target = $region17
    $region16: #{tpu_custom_call.1} parent=1 // pred_region
      _
    $region17: #{tpu_custom_call.1} parent=1 // pred_fallthru
      _
    // Predicated region
    $region18: #{tpu_custom_call.1} parent=1 // pred_check
      _
    $region19: #{tpu_custom_call.1} parent=1 // pred_check_branch
      %47 = sbr.rel (0) target = $region21
    $region20: #{tpu_custom_call.1} parent=1 // pred_region
      _
    $region21: #{tpu_custom_call.1} parent=1 // pred_fallthru
      _
    // Predicated region
    $region22: #{tpu_custom_call.1} parent=1 // pred_check
      _
    $region23: #{tpu_custom_call.1} parent=1 // pred_check_branch
      %49 = sbr.rel (0) target = $region25
    $region24: #{tpu_custom_call.1} parent=1 // pred_region
      %s51 = ssub.s32 64, 64
      %52 = vsyncadd [#allocation9], %s51
      %s54 = sshll.u32 [#allocation8], 4
      %s55 = int_to_ptr.vmem [resolvable:$true] %s54
      %57 = dma.hbm_to_vmem [thread:$0]  %s5, 64, %s55, [#allocation9]
    $region25: #{tpu_custom_call.1} parent=1 // pred_fallthru
      _
    // Predicated region
    $region26: #{tpu_custom_call.1} parent=1 // pred_check
      _
    $region27: #{tpu_custom_call.1} parent=1 // pred_check_branch
      %59 = sbr.rel (0) target = $region29
    $region28: #{tpu_custom_call.1} parent=1 // pred_region
      %s61 = ssub.s32 16, 16
      %62 = vsyncadd [#allocation9], %s61
      %s64 = sshll.u32 [#allocation10], 4
      %s65 = int_to_ptr.vmem [resolvable:$true] %s64
      %67 = dma.hbm_to_vmem [thread:$0]  %s6, 16, %s65, [#allocation9]
    $region29: #{tpu_custom_call.1} parent=1 // pred_fallthru
      _
    // Predicated region
    $region30: #{tpu_custom_call.1} parent=1 // pred_check
      _
    $region31: #{tpu_custom_call.1} parent=1 // pred_check_branch
      %69 = sbr.rel (0) target = $region33
    $region32: #{tpu_custom_call.1} parent=1 // pred_region
      _
    $region33: #{tpu_custom_call.1} parent=1 // pred_fallthru
      _
    // Predicated region
    $region34: #{tpu_custom_call.1} parent=1 // pred_check
      _
    $region35: #{tpu_custom_call.1} parent=1 // pred_check_branch
      %71 = sbr.rel (0) target = $region37
    $region36: #{tpu_custom_call.1} parent=1 // pred_region
      %s73 = ssub.s32 384, 384
      %74 = vsyncadd [#allocation12], %s73
      %s75 = sshll.u32 [#allocation11], 4
      %s76 = int_to_ptr.vmem [resolvable:$true] %s75
      %81 = dma.hbm_to_vmem [thread:$0]  %s8, 384, %s76, [#allocation12], 64, 64, 4
    $region37: #{tpu_custom_call.1} parent=1 // pred_fallthru
      _
    // Predicated region
    $region38: #{tpu_custom_call.1} parent=1 // pred_check
      _
    $region39: #{tpu_custom_call.1} parent=1 // pred_check_branch
      %83 = sbr.rel (0) target = $region41
    $region40: #{tpu_custom_call.1} parent=1 // pred_region
      %s85 = ssub.s32 16, 16
      %86 = vsyncadd [#allocation12], %s85
      %s88 = sshll.u32 [#allocation13], 4
      %s89 = int_to_ptr.vmem [resolvable:$true] %s88
      %91 = dma.hbm_to_vmem [thread:$0]  %s9, 16, %s89, [#allocation12]
    $region41: #{tpu_custom_call.1} parent=1 // pred_fallthru
      _
    // Predicated region
    $region42: #{tpu_custom_call.1} parent=1 // pred_check
      _
    $region43: #{tpu_custom_call.1} parent=1 // pred_check_branch
      %93 = sbr.rel (0) target = $region45
    $region44: #{tpu_custom_call.1} parent=1 // pred_region
      _
    $region45: #{tpu_custom_call.1} parent=1 // pred_fallthru
      _
    // Predicated region
    $region46: #{tpu_custom_call.1} parent=1 // pred_check
      _
    $region47: #{tpu_custom_call.1} parent=1 // pred_check_branch
      %95 = sbr.rel (0) target = $region49
    $region48: #{tpu_custom_call.1} parent=1 // pred_region
      _
    $region49: #{tpu_custom_call.1} parent=1 // pred_fallthru
      _
    // Predicated region
    $region50: #{tpu_custom_call.1} parent=1 // pred_check
      _
    $region51: #{tpu_custom_call.1} parent=1 // pred_check_branch
      %97 = sbr.rel (0) target = $region53
    $region52: #{tpu_custom_call.1} parent=1 // pred_region
      %98 = dma.done [#allocation6], 1024
    $region53: #{tpu_custom_call.1} parent=1 // pred_fallthru
      _
    // Predicated region
    $region54: #{tpu_custom_call.1} parent=1 // pred_check
      _
    $region55: #{tpu_custom_call.1} parent=1 // pred_check_branch
      %100 = sbr.rel (0) target = $region57
    $region56: #{tpu_custom_call.1} parent=1 // pred_region
      %101 = dma.done [#allocation9], 64
    $region57: #{tpu_custom_call.1} parent=1 // pred_fallthru
      _
    // Predicated region
    $region58: #{tpu_custom_call.1} parent=1 // pred_check
      _
    $region59: #{tpu_custom_call.1} parent=1 // pred_check_branch
      %103 = sbr.rel (0) target = $region61
    $region60: #{tpu_custom_call.1} parent=1 // pred_region
      %104 = dma.done [#allocation9], 16
    $region61: #{tpu_custom_call.1} parent=1 // pred_fallthru
      _
    // Predicated region
    $region62: #{tpu_custom_call.1} parent=1 // pred_check
      _
    $region63: #{tpu_custom_call.1} parent=1 // pred_check_branch
      %106 = sbr.rel (0) target = $region65
    $region64: #{tpu_custom_call.1} parent=1 // pred_region
      %107 = dma.done [#allocation12], 384
    $region65: #{tpu_custom_call.1} parent=1 // pred_fallthru
      _
    // Predicated region
    $region66: #{tpu_custom_call.1} parent=1 // pred_check
      _
    $region67: #{tpu_custom_call.1} parent=1 // pred_check_branch
      %109 = sbr.rel (0) target = $region69
    $region68: #{tpu_custom_call.1} parent=1 // pred_region
      %110 = dma.done [#allocation12], 16
    $region69: #{tpu_custom_call.1} parent=1 // pred_fallthru
      _
    %v112 = vld [vmem:[%s0] sm:$0x3]
    %v113 = vpack.c.bf16 %v112, %v112
    %v114 = vld [vmem:[%s4] sm:$0xff]
    %v115 = vld [vmem:[%s4 + $0x8] sm:$0xff]
    %v116 = vld [vmem:[%s4 + $0x10] sm:$0xff]
    %v117 = vld [vmem:[%s4 + $0x18] sm:$0xff]
    %v118 = vld [vmem:[%s4 + $0x20] sm:$0xff]
    %v119 = vld [vmem:[%s4 + $0x28] sm:$0xff]
    %v120 = vld [vmem:[%s4 + $0x30] sm:$0xff]
    %v121 = vld [vmem:[%s4 + $0x38] sm:$0xff]
    %v122 = vld [vmem:[#allocation8] sm:$0xf]
    %v124 = vlaneseq
    %v125 = vshrl.u32 %v124, 7
    %v126 = vsub.s32 0, %v125
    %v127 = vrot.slane %v122, %v126
    %v128 = vlaneseq
    %v129 = vshrl.u32 %v128, 7
    %v130 = vsub.s32 1, %v129
    %v131 = vrot.slane %v122, %v130
    %v132 = vlaneseq
    %v133 = vshrl.u32 %v132, 7
    %v134 = vsub.s32 2, %v133
    %v135 = vrot.slane %v122, %v134
    %v136 = vlaneseq
    %v137 = vshrl.u32 %v136, 7
    %v138 = vsub.s32 3, %v137
    %v139 = vrot.slane %v122, %v138
    %v152 = vunpack.c.l.b16 %v114
    %v153 = vunpack.c.h.b16 %v114
    %v154 = vunpack.c.l.b16 %v115
    %v155 = vunpack.c.h.b16 %v115
    %v156 = vunpack.c.l.b16 %v116
    %v157 = vunpack.c.h.b16 %v116
    %v158 = vunpack.c.l.b16 %v117
    %v159 = vunpack.c.h.b16 %v117
    %v160 = vunpack.c.l.b16 %v118
    %v161 = vunpack.c.h.b16 %v118
    %v162 = vunpack.c.l.b16 %v119
    %v163 = vunpack.c.h.b16 %v119
    %v164 = vunpack.c.l.b16 %v120
    %v165 = vunpack.c.h.b16 %v120
    %v166 = vunpack.c.l.b16 %v121
    %v167 = vunpack.c.h.b16 %v121
    %v168 = vpack.c.b16 %v156, %v152
    %v169 = vpack.c.b16 %v157, %v153
    %v170 = vpack.c.b16 %v158, %v154
    %v171 = vpack.c.b16 %v159, %v155
    %v172 = vpack.c.b16 %v164, %v160
    %v173 = vpack.c.b16 %v165, %v161
    %v174 = vpack.c.b16 %v166, %v162
    %v175 = vpack.c.b16 %v167, %v163
    %vm184 = vcmask 261120
    %v186 = vsel %vm184, %v113, 0
    %188 = vmatprep.subr.bf16.mxu0 %v169
    %189 = vmatpush1.bf16.msra.mxu0 %v168
    %190 = vmatprep.subr.bf16.mxu0 %v173
    %191 = vmatpush1.bf16.msra.mxu0 %v172
    %192 = vmatprep.subr.bf16.mxu0 0
    %193 = vmatpush1.bf16.msra.mxu0 0
    %194 = vmatprep.subr.bf16.mxu0 0
    %195 = vmatpush1.bf16.msra.mxu0 0
    %196 = vmatprep.subr.bf16.mxu0 0
    %197 = vmatpush1.bf16.msra.mxu0 0
    %198 = vmatprep.subr.bf16.mxu0 0
    %199 = vmatpush1.bf16.msra.mxu0 0
    %200 = vmatprep.subr.bf16.mxu0 0
    %201 = vmatpush1.bf16.msra.mxu0 0
    %202 = vmatprep.subr.bf16.mxu0 0
    %203 = vmatpush1.bf16.msra.mxu0 0
    %204 = vmatprep.subr.bf16.mxu0 0
    %205 = vmatpush1.bf16.msra.mxu0 0
    %206 = vmatprep.subr.bf16.mxu0 0
    %207 = vmatpush1.bf16.msra.mxu0 0
    %208 = vmatprep.subr.bf16.mxu0 0
    %209 = vmatpush1.bf16.msra.mxu0 0
    %210 = vmatprep.subr.bf16.mxu0 0
    %211 = vmatpush1.bf16.msra.mxu0 0
    %212 = vmatprep.subr.bf16.mxu0 0
    %213 = vmatpush1.bf16.msra.mxu0 0
    %214 = vmatprep.subr.bf16.mxu0 0
    %215 = vmatpush1.bf16.msra.mxu0 0
    %216 = vmatprep.subr.bf16.mxu0 0
    %217 = vmatpush1.bf16.msra.mxu0 0
    %218 = vmatprep.subr.bf16.mxu0 0
    %219 = vmatpush1.bf16.msra.mxu0 0
    %220 = vmatprep.mubr.bf16.mxu0 0
    %221 = vmatmul.mubr.bf16.gmra.mrb[0].mxu0 %v186
    %v222 = vpop.f32.mrb[0].mxu0
    %v223 = vadd.f32 %v127, %v222
    %v224 = vpop.f32.mrb[0].mxu0
    %v225 = vadd.f32 %v131, %v224
    %v226 = vpop.f32.mrb[0].mxu0
    %v227 = vpop.f32.mrb[0].mxu0
    %228 = vdwg.mxu0
    %229 = vmatprep.subr.bf16.mxu0 %v171
    %230 = vmatpush1.bf16.msra.mxu0 %v170
    %231 = vmatprep.subr.bf16.mxu0 %v175
    %232 = vmatpush1.bf16.msra.mxu0 %v174
    %233 = vmatprep.subr.bf16.mxu0 0
    %234 = vmatpush1.bf16.msra.mxu0 0
    %235 = vmatprep.subr.bf16.mxu0 0
    %236 = vmatpush1.bf16.msra.mxu0 0
    %237 = vmatprep.subr.bf16.mxu0 0
    %238 = vmatpush1.bf16.msra.mxu0 0
    %239 = vmatprep.subr.bf16.mxu0 0
    %240 = vmatpush1.bf16.msra.mxu0 0
    %241 = vmatprep.subr.bf16.mxu0 0
    %242 = vmatpush1.bf16.msra.mxu0 0
    %243 = vmatprep.subr.bf16.mxu0 0
    %244 = vmatpush1.bf16.msra.mxu0 0
    %245 = vmatprep.subr.bf16.mxu0 0
    %246 = vmatpush1.bf16.msra.mxu0 0
    %247 = vmatprep.subr.bf16.mxu0 0
    %248 = vmatpush1.bf16.msra.mxu0 0
    %249 = vmatprep.subr.bf16.mxu0 0
    %250 = vmatpush1.bf16.msra.mxu0 0
    %251 = vmatprep.subr.bf16.mxu0 0
    %252 = vmatpush1.bf16.msra.mxu0 0
    %253 = vmatprep.subr.bf16.mxu0 0
    %254 = vmatpush1.bf16.msra.mxu0 0
    %255 = vmatprep.subr.bf16.mxu0 0
    %256 = vmatpush1.bf16.msra.mxu0 0
    %257 = vmatprep.subr.bf16.mxu0 0
    %258 = vmatpush1.bf16.msra.mxu0 0
    %259 = vmatprep.subr.bf16.mxu0 0
    %260 = vmatpush1.bf16.msra.mxu0 0
    %261 = vmatprep.mubr.bf16.mxu0 0
    %262 = vmatmul.mubr.bf16.gmra.mrb[0].mxu0 %v186
    %v263 = vpop.f32.mrb[0].mxu0
    %v264 = vadd.f32 %v135, %v263
    %v265 = vpop.f32.mrb[0].mxu0
    %v266 = vadd.f32 %v139, %v265
    %v267 = vpop.f32.mrb[0].mxu0
    %v268 = vpop.f32.mrb[0].mxu0
    %269 = vdwg.mxu0
    %v274 = vcombine.low %v223, %v225
    %v275 = vcombine.low %v264, %v266
    %v277 = vunpack.c.l.s4 1983009808
    %v278 = vunpack.c.0.s8 %v277
    %v279 = vlaneseq
    %v280 = vshrl.u32 %v279, 7
    %v281 = vsub.s32 %v278, %v280
    %v282 = vrot.slane %v274, %v281
    %v284 = vunpack.c.l.s4 1983009808
    %v285 = vunpack.c.0.s8 %v284
    %v286 = vlaneseq
    %v287 = vshrl.u32 %v286, 7
    %v288 = vsub.s32 %v285, %v287
    %v289 = vrot.slane %v275, %v288
    %v290 = vcombine.low %v282, %v289
    %292 = vst [vmem:[#allocation2] sm:$0xff] %v290
    %v293 = vld [vmem:[#allocation2] sm:$0x1]
    %vm294 = vcmask 385024
    %295 = vst.msk [vmem:[#allocation3] sm:$0x1] %vm294, %v293
    %v296 = vld [vmem:[#allocation2 + $0x2] sm:$0x1]
    %s297 = scalar_lea.vmem [#allocation3], 1
    %298 = vst.msk [vmem:[%s297] sm:$0x1] %vm294, %v296
    %v299 = vld [vmem:[#allocation2 + $0x4] sm:$0x1]
    %s300 = scalar_lea.vmem [#allocation3], 2
    %301 = vst.msk [vmem:[%s300] sm:$0x1] %vm294, %v299
    %v302 = vld [vmem:[#allocation2 + $0x6] sm:$0x1]
    %s303 = scalar_lea.vmem [#allocation3], 3
    %304 = vst.msk [vmem:[%s303] sm:$0x1] %vm294, %v302
    %v305 = vld [vmem:[#allocation2 + $0x1] sm:$0x1]
    %s306 = scalar_lea.vmem [#allocation3], 4
    %307 = vst.msk [vmem:[%s306] sm:$0x1] %vm294, %v305
    %v308 = vld [vmem:[#allocation2 + $0x3] sm:$0x1]
    %s309 = scalar_lea.vmem [#allocation3], 5
    %310 = vst.msk [vmem:[%s309] sm:$0x1] %vm294, %v308
    %v311 = vld [vmem:[#allocation2 + $0x5] sm:$0x1]
    %s312 = scalar_lea.vmem [#allocation3], 6
    %313 = vst.msk [vmem:[%s312] sm:$0x1] %vm294, %v311
    %v314 = vld [vmem:[#allocation2 + $0x7] sm:$0x1]
    %s315 = scalar_lea.vmem [#allocation3], 7
    %316 = vst.msk [vmem:[%s315] sm:$0x1] %vm294, %v314
    %v317 = vld [vmem:[%s1] sm:$0xff]
    %v318 = vld [vmem:[%s1 + $0x8] sm:$0xff]
    %v319 = vld [vmem:[%s1 + $0x10] sm:$0xff]
    %v320 = vld [vmem:[%s1 + $0x18] sm:$0xff]
    %v321 = vld [vmem:[%s1 + $0x20] sm:$0xff]
    %v322 = vld [vmem:[%s1 + $0x28] sm:$0xff]
    %v323 = vld [vmem:[%s1 + $0x30] sm:$0xff]
    %v324 = vld [vmem:[%s1 + $0x38] sm:$0xff]
    %v325 = vld [vmem:[#allocation5] sm:$0xff]
    %v326 = vld [vmem:[#allocation5 + $0x8] sm:$0xff]
    %v327 = vld [vmem:[#allocation5 + $0x10] sm:$0xff]
    %v328 = vld [vmem:[#allocation5 + $0x18] sm:$0xff]
    %v329 = vld [vmem:[#allocation5 + $0x20] sm:$0xff]
    %v330 = vld [vmem:[#allocation5 + $0x28] sm:$0xff]
    %v331 = vld [vmem:[#allocation5 + $0x30] sm:$0xff]
    %v332 = vld [vmem:[#allocation5 + $0x38] sm:$0xff]
    %v333 = vld [vmem:[#allocation3] sm:$0x1]
    %v334 = vld [vmem:[#allocation3 + $0x1] sm:$0x1]
    %v335 = vld [vmem:[#allocation3 + $0x2] sm:$0x1]
    %v336 = vld [vmem:[#allocation3 + $0x3] sm:$0x1]
    %v337 = vld [vmem:[#allocation3 + $0x4] sm:$0x1]
    %v338 = vld [vmem:[#allocation3 + $0x5] sm:$0x1]
    %v339 = vld [vmem:[#allocation3 + $0x6] sm:$0x1]
    %v340 = vld [vmem:[#allocation3 + $0x7] sm:$0x1]
    %v349 = vlaneseq
    %v350 = vshrl.u32 %v349, 7
    %v351 = vsub.s32 0, %v350
    %v352 = vrot.slane %v333, %v351
    %v353 = vlaneseq
    %v354 = vshrl.u32 %v353, 7
    %v355 = vsub.s32 0, %v354
    %v356 = vrot.slane %v334, %v355
    %v357 = vlaneseq
    %v358 = vshrl.u32 %v357, 7
    %v359 = vsub.s32 0, %v358
    %v360 = vrot.slane %v335, %v359
    %v361 = vlaneseq
    %v362 = vshrl.u32 %v361, 7
    %v363 = vsub.s32 0, %v362
    %v364 = vrot.slane %v336, %v363
    %v365 = vlaneseq
    %v366 = vshrl.u32 %v365, 7
    %v367 = vsub.s32 0, %v366
    %v368 = vrot.slane %v337, %v367
    %v369 = vlaneseq
    %v370 = vshrl.u32 %v369, 7
    %v371 = vsub.s32 0, %v370
    %v372 = vrot.slane %v338, %v371
    %v373 = vlaneseq
    %v374 = vshrl.u32 %v373, 7
    %v375 = vsub.s32 0, %v374
    %v376 = vrot.slane %v339, %v375
    %v377 = vlaneseq
    %v378 = vshrl.u32 %v377, 7
    %v379 = vsub.s32 0, %v378
    %v380 = vrot.slane %v340, %v379
    %v389 = vmul.f32 %v352, %v317
    %v390 = vmul.f32 %v356, %v318
    %v391 = vmul.f32 %v360, %v319
    %v392 = vmul.f32 %v364, %v320
    %v393 = vmul.f32 %v368, %v321
    %v394 = vmul.f32 %v372, %v322
    %v395 = vmul.f32 %v376, %v323
    %v396 = vmul.f32 %v380, %v324
    %vm397 = vcmask 392192
    %v398 = vsel %vm397, %v389, 0.0
    %399 = vadd.xlane.f32.xlu0 %v398
    %v400 = vpop.xlane.xlu0 %399
    %v401 = vsel %vm397, %v390, 0.0
    %402 = vadd.xlane.f32.xlu0 %v401
    %v403 = vpop.xlane.xlu0 %402
    %v404 = vsel %vm397, %v391, 0.0
    %405 = vadd.xlane.f32.xlu0 %v404
    %v406 = vpop.xlane.xlu0 %405
    %v407 = vsel %vm397, %v392, 0.0
    %408 = vadd.xlane.f32.xlu0 %v407
    %v409 = vpop.xlane.xlu0 %408
    %v410 = vsel %vm397, %v393, 0.0
    %411 = vadd.xlane.f32.xlu0 %v410
    %v412 = vpop.xlane.xlu0 %411
    %v413 = vsel %vm397, %v394, 0.0
    %414 = vadd.xlane.f32.xlu0 %v413
    %v415 = vpop.xlane.xlu0 %414
    %v416 = vsel %vm397, %v395, 0.0
    %417 = vadd.xlane.f32.xlu0 %v416
    %v418 = vpop.xlane.xlu0 %417
    %v419 = vsel %vm397, %v396, 0.0
    %420 = vadd.xlane.f32.xlu0 %v419
    %v421 = vpop.xlane.xlu0 %420
    %v422 = vld [vmem:[%s3] sm:$0xff]
    %v423 = vld [vmem:[%s3 + $0x8] sm:$0xff]
    %v424 = vld [vmem:[%s3 + $0x10] sm:$0xff]
    %v425 = vld [vmem:[%s3 + $0x18] sm:$0xff]
    %v426 = vld [vmem:[%s3 + $0x20] sm:$0xff]
    %v427 = vld [vmem:[%s3 + $0x28] sm:$0xff]
    %v428 = vld [vmem:[%s3 + $0x30] sm:$0xff]
    %v429 = vld [vmem:[%s3 + $0x38] sm:$0xff]
    %vm430 = vcmp.gt.f32.partialorder %v422, 0.0
    %vm431 = vcmp.gt.f32.partialorder %v423, 0.0
    %vm432 = vcmp.gt.f32.partialorder %v424, 0.0
    %vm433 = vcmp.gt.f32.partialorder %v425, 0.0
    %vm434 = vcmp.gt.f32.partialorder %v426, 0.0
    %vm435 = vcmp.gt.f32.partialorder %v427, 0.0
    %vm436 = vcmp.gt.f32.partialorder %v428, 0.0
    %vm437 = vcmp.gt.f32.partialorder %v429, 0.0
    %v438 = vsel %vm430, -1000000.0, %v400
    %v439 = vsel %vm431, -1000000.0, %v403
    %v440 = vsel %vm432, -1000000.0, %v406
    %v441 = vsel %vm433, -1000000.0, %v409
    %v442 = vsel %vm434, -1000000.0, %v412
    %v443 = vsel %vm435, -1000000.0, %v415
    %v444 = vsel %vm436, -1000000.0, %v418
    %v445 = vsel %vm437, -1000000.0, %v421
    %vm446 = vcmask 7168
    %v447 = vsel %vm446, %v438, -inf
    %v448 = vrot.slane %v447, 4
    %v449 = vmax.f32 %v447, %v448
    %v450 = vrot.slane %v449, 2
    %v451 = vmax.f32 %v449, %v450
    %v452 = vrot.slane %v451, 1
    %v453 = vmax.f32 %v451, %v452
    %v454 = vsel %vm446, %v439, -inf
    %v455 = vrot.slane %v454, 4
    %v456 = vmax.f32 %v454, %v455
    %v457 = vrot.slane %v456, 2
    %v458 = vmax.f32 %v456, %v457
    %v459 = vrot.slane %v458, 1
    %v460 = vmax.f32 %v458, %v459
    %v461 = vsel %vm446, %v440, -inf
    %v462 = vrot.slane %v461, 4
    %v463 = vmax.f32 %v461, %v462
    %v464 = vrot.slane %v463, 2
    %v465 = vmax.f32 %v463, %v464
    %v466 = vrot.slane %v465, 1
    %v467 = vmax.f32 %v465, %v466
    %v468 = vsel %vm446, %v441, -inf
    %v469 = vrot.slane %v468, 4
    %v470 = vmax.f32 %v468, %v469
    %v471 = vrot.slane %v470, 2
    %v472 = vmax.f32 %v470, %v471
    %v473 = vrot.slane %v472, 1
    %v474 = vmax.f32 %v472, %v473
    %v475 = vsel %vm446, %v442, -inf
    %v476 = vrot.slane %v475, 4
    %v477 = vmax.f32 %v475, %v476
    %v478 = vrot.slane %v477, 2
    %v479 = vmax.f32 %v477, %v478
    %v480 = vrot.slane %v479, 1
    %v481 = vmax.f32 %v479, %v480
    %v482 = vsel %vm446, %v443, -inf
    %v483 = vrot.slane %v482, 4
    %v484 = vmax.f32 %v482, %v483
    %v485 = vrot.slane %v484, 2
    %v486 = vmax.f32 %v484, %v485
    %v487 = vrot.slane %v486, 1
    %v488 = vmax.f32 %v486, %v487
    %v489 = vsel %vm446, %v444, -inf
    %v490 = vrot.slane %v489, 4
    %v491 = vmax.f32 %v489, %v490
    %v492 = vrot.slane %v491, 2
    %v493 = vmax.f32 %v491, %v492
    %v494 = vrot.slane %v493, 1
    %v495 = vmax.f32 %v493, %v494
    %v496 = vsel %vm446, %v445, -inf
    %v497 = vrot.slane %v496, 4
    %v498 = vmax.f32 %v496, %v497
    %v499 = vrot.slane %v498, 2
    %v500 = vmax.f32 %v498, %v499
    %v501 = vrot.slane %v500, 1
    %v502 = vmax.f32 %v500, %v501
    %v503 = vsub.f32 %v438, %v453
    %v504 = vsub.f32 %v439, %v460
    %v505 = vsub.f32 %v440, %v467
    %v506 = vsub.f32 %v441, %v474
    %v507 = vsub.f32 %v442, %v481
    %v508 = vsub.f32 %v443, %v488
    %v509 = vsub.f32 %v444, %v495
    %v510 = vsub.f32 %v445, %v502
    %v511 = vmul.f32 %v503, 1.442695
    %v512 = vpow.pop %v511
    %v513 = vmul.f32 %v504, 1.442695
    %v514 = vpow.pop %v513
    %v515 = vmul.f32 %v505, 1.442695
    %v516 = vpow.pop %v515
    %v517 = vmul.f32 %v506, 1.442695
    %v518 = vpow.pop %v517
    %v519 = vmul.f32 %v507, 1.442695
    %v520 = vpow.pop %v519
    %v521 = vmul.f32 %v508, 1.442695
    %v522 = vpow.pop %v521
    %v523 = vmul.f32 %v509, 1.442695
    %v524 = vpow.pop %v523
    %v525 = vmul.f32 %v510, 1.442695
    %v526 = vpow.pop %v525
    %v527 = vsel %vm446, %v512, 0.0
    %v528 = vrot.slane %v527, 4
    %v529 = vadd.f32 %v527, %v528
    %v530 = vrot.slane %v529, 2
    %v531 = vadd.f32 %v529, %v530
    %v532 = vrot.slane %v531, 1
    %v533 = vadd.f32 %v531, %v532
    %v534 = vsel %vm446, %v514, 0.0
    %v535 = vrot.slane %v534, 4
    %v536 = vadd.f32 %v534, %v535
    %v537 = vrot.slane %v536, 2
    %v538 = vadd.f32 %v536, %v537
    %v539 = vrot.slane %v538, 1
    %v540 = vadd.f32 %v538, %v539
    %v541 = vsel %vm446, %v516, 0.0
    %v542 = vrot.slane %v541, 4
    %v543 = vadd.f32 %v541, %v542
    %v544 = vrot.slane %v543, 2
    %v545 = vadd.f32 %v543, %v544
    %v546 = vrot.slane %v545, 1
    %v547 = vadd.f32 %v545, %v546
    %v548 = vsel %vm446, %v518, 0.0
    %v549 = vrot.slane %v548, 4
    %v550 = vadd.f32 %v548, %v549
    %v551 = vrot.slane %v550, 2
    %v552 = vadd.f32 %v550, %v551
    %v553 = vrot.slane %v552, 1
    %v554 = vadd.f32 %v552, %v553
    %v555 = vsel %vm446, %v520, 0.0
    %v556 = vrot.slane %v555, 4
    %v557 = vadd.f32 %v555, %v556
    %v558 = vrot.slane %v557, 2
    %v559 = vadd.f32 %v557, %v558
    %v560 = vrot.slane %v559, 1
    %v561 = vadd.f32 %v559, %v560
    %v562 = vsel %vm446, %v522, 0.0
    %v563 = vrot.slane %v562, 4
    %v564 = vadd.f32 %v562, %v563
    %v565 = vrot.slane %v564, 2
    %v566 = vadd.f32 %v564, %v565
    %v567 = vrot.slane %v566, 1
    %v568 = vadd.f32 %v566, %v567
    %v569 = vsel %vm446, %v524, 0.0
    %v570 = vrot.slane %v569, 4
    %v571 = vadd.f32 %v569, %v570
    %v572 = vrot.slane %v571, 2
    %v573 = vadd.f32 %v571, %v572
    %v574 = vrot.slane %v573, 1
    %v575 = vadd.f32 %v573, %v574
    %v576 = vsel %vm446, %v526, 0.0
    %v577 = vrot.slane %v576, 4
    %v578 = vadd.f32 %v576, %v577
    %v579 = vrot.slane %v578, 2
    %v580 = vadd.f32 %v578, %v579
    %v581 = vrot.slane %v580, 1
    %v582 = vadd.f32 %v580, %v581
    %v583 = vrcp.pop %v533
    %v584 = vrcp.pop %v540
    %v585 = vrcp.pop %v547
    %v586 = vrcp.pop %v554
    %v587 = vrcp.pop %v561
    %v588 = vrcp.pop %v568
    %v589 = vrcp.pop %v575
    %v590 = vrcp.pop %v582
    %v591 = vmul.f32 %v512, %v583
    %v592 = vmul.f32 %v514, %v584
    %v593 = vmul.f32 %v516, %v585
    %v594 = vmul.f32 %v518, %v586
    %v595 = vmul.f32 %v520, %v587
    %v596 = vmul.f32 %v522, %v588
    %v597 = vmul.f32 %v524, %v589
    %v598 = vmul.f32 %v526, %v590
    %599 = vst.msk [vmem:[%s12] sm:$0xff] %vm446, %v591
    %600 = vst.msk [vmem:[%s12 + $0x8] sm:$0xff] %vm446, %v592
    %601 = vst.msk [vmem:[%s12 + $0x10] sm:$0xff] %vm446, %v593
    %602 = vst.msk [vmem:[%s12 + $0x18] sm:$0xff] %vm446, %v594
    %603 = vst.msk [vmem:[%s12 + $0x20] sm:$0xff] %vm446, %v595
    %604 = vst.msk [vmem:[%s12 + $0x28] sm:$0xff] %vm446, %v596
    %605 = vst.msk [vmem:[%s12 + $0x30] sm:$0xff] %vm446, %v597
    %606 = vst.msk [vmem:[%s12 + $0x38] sm:$0xff] %vm446, %v598
    %608 = vset.pattern.permute.xlu0 0
    %609 = vperm.xlu0 %608, %v591
    %v610 = vpop.permute.xlu0 %609
    %613 = vset.pattern.permute.xlu0 0
    %614 = vperm.xlu0 %613, %v592
    %v615 = vpop.permute.xlu0 %614
    %618 = vset.pattern.permute.xlu0 0
    %619 = vperm.xlu0 %618, %v593
    %v620 = vpop.permute.xlu0 %619
    %623 = vset.pattern.permute.xlu0 0
    %624 = vperm.xlu0 %623, %v594
    %v625 = vpop.permute.xlu0 %624
    %628 = vset.pattern.permute.xlu0 0
    %629 = vperm.xlu0 %628, %v595
    %v630 = vpop.permute.xlu0 %629
    %633 = vset.pattern.permute.xlu0 0
    %634 = vperm.xlu0 %633, %v596
    %v635 = vpop.permute.xlu0 %634
    %638 = vset.pattern.permute.xlu0 0
    %639 = vperm.xlu0 %638, %v597
    %v640 = vpop.permute.xlu0 %639
    %643 = vset.pattern.permute.xlu0 0
    %644 = vperm.xlu0 %643, %v598
    %v645 = vpop.permute.xlu0 %644
    %v647 = vmul.f32 %v610, %v325
    %v648 = vmul.f32 %v615, %v326
    %v649 = vmul.f32 %v620, %v327
    %v650 = vmul.f32 %v625, %v328
    %v651 = vmul.f32 %v630, %v329
    %v652 = vmul.f32 %v635, %v330
    %v653 = vmul.f32 %v640, %v331
    %v654 = vmul.f32 %v645, %v332
    %v655 = vsel %vm397, %v647, 0.0
    %v656 = vrot.slane %v655, 4
    %v657 = vadd.f32 %v655, %v656
    %v658 = vrot.slane %v657, 2
    %v659 = vadd.f32 %v657, %v658
    %v660 = vrot.slane %v659, 1
    %v661 = vadd.f32 %v659, %v660
    %v662 = vsel %vm397, %v648, 0.0
    %v663 = vrot.slane %v662, 4
    %v664 = vadd.f32 %v662, %v663
    %v665 = vrot.slane %v664, 2
    %v666 = vadd.f32 %v664, %v665
    %v667 = vrot.slane %v666, 1
    %v668 = vadd.f32 %v666, %v667
    %v669 = vsel %vm397, %v649, 0.0
    %v670 = vrot.slane %v669, 4
    %v671 = vadd.f32 %v669, %v670
    %v672 = vrot.slane %v671, 2
    %v673 = vadd.f32 %v671, %v672
    %v674 = vrot.slane %v673, 1
    %v675 = vadd.f32 %v673, %v674
    %v676 = vsel %vm397, %v650, 0.0
    %v677 = vrot.slane %v676, 4
    %v678 = vadd.f32 %v676, %v677
    %v679 = vrot.slane %v678, 2
    %v680 = vadd.f32 %v678, %v679
    %v681 = vrot.slane %v680, 1
    %v682 = vadd.f32 %v680, %v681
    %v683 = vsel %vm397, %v651, 0.0
    %v684 = vrot.slane %v683, 4
    %v685 = vadd.f32 %v683, %v684
    %v686 = vrot.slane %v685, 2
    %v687 = vadd.f32 %v685, %v686
    %v688 = vrot.slane %v687, 1
    %v689 = vadd.f32 %v687, %v688
    %v690 = vsel %vm397, %v652, 0.0
    %v691 = vrot.slane %v690, 4
    %v692 = vadd.f32 %v690, %v691
    %v693 = vrot.slane %v692, 2
    %v694 = vadd.f32 %v692, %v693
    %v695 = vrot.slane %v694, 1
    %v696 = vadd.f32 %v694, %v695
    %v697 = vsel %vm397, %v653, 0.0
    %v698 = vrot.slane %v697, 4
    %v699 = vadd.f32 %v697, %v698
    %v700 = vrot.slane %v699, 2
    %v701 = vadd.f32 %v699, %v700
    %v702 = vrot.slane %v701, 1
    %v703 = vadd.f32 %v701, %v702
    %v704 = vsel %vm397, %v654, 0.0
    %v705 = vrot.slane %v704, 4
    %v706 = vadd.f32 %v704, %v705
    %v707 = vrot.slane %v706, 2
    %v708 = vadd.f32 %v706, %v707
    %v709 = vrot.slane %v708, 1
    %v710 = vadd.f32 %v708, %v709
    %711 = vst.msk [vmem:[#allocation14] sm:$0x1] %vm294, %v661
    %712 = vst.msk [vmem:[#allocation14 + $0x1] sm:$0x1] %vm294, %v668
    %713 = vst.msk [vmem:[#allocation14 + $0x2] sm:$0x1] %vm294, %v675
    %714 = vst.msk [vmem:[#allocation14 + $0x3] sm:$0x1] %vm294, %v682
    %715 = vst.msk [vmem:[#allocation14 + $0x4] sm:$0x1] %vm294, %v689
    %716 = vst.msk [vmem:[#allocation14 + $0x5] sm:$0x1] %vm294, %v696
    %717 = vst.msk [vmem:[#allocation14 + $0x6] sm:$0x1] %vm294, %v703
    %718 = vst.msk [vmem:[#allocation14 + $0x7] sm:$0x1] %vm294, %v710
    %v719 = vld [vmem:[#allocation14] sm:$0xff]
    %v720 = vld [vmem:[#allocation10] sm:$0x1]
    %v722 = vlaneseq
    %v723 = vshrl.u32 %v722, 7
    %v724 = vsub.s32 0, %v723
    %v725 = vrot.slane %v720, %v724
    %v727 = vmul.f32 %v719, %v725
    %v728 = vsel %vm397, %v727, 0.0
    %729 = vadd.xlane.f32.xlu0 %v728
    %v730 = vpop.xlane.xlu0 %729
    %v731 = vld [vmem:[#allocation4] sm:$0x1]
    %v733 = vlaneseq
    %v734 = vshrl.u32 %v733, 7
    %v735 = vsub.s32 0, %v734
    %v736 = vrot.slane %v731, %v735
    %v738 = vadd.f32 %v730, %v736
    %739 = vst.msk [vmem:[%s15] sm:$0xff] %vm446, %v738
    %v740 = vpack.c.bf16 %v719, %v719
    %v741 = vld [vmem:[#allocation11] sm:$0xf]
    %v742 = vld [vmem:[#allocation11 + $0x4] sm:$0xf]
    %v743 = vld [vmem:[#allocation11 + $0x8] sm:$0xf]
    %v744 = vld [vmem:[#allocation11 + $0xc] sm:$0xf]
    %v745 = vld [vmem:[#allocation11 + $0x10] sm:$0xf]
    %v746 = vld [vmem:[#allocation11 + $0x14] sm:$0xf]
    %v747 = vld [vmem:[#allocation13] sm:$0x1]
    %v749 = vlaneseq
    %v750 = vshrl.u32 %v749, 7
    %v751 = vsub.s32 0, %v750
    %v752 = vrot.slane %v747, %v751
    %v760 = vunpack.c.l.b16 %v741
    %v761 = vunpack.c.l.b16 %v742
    %v762 = vunpack.c.l.b16 %v743
    %v763 = vunpack.c.l.b16 %v744
    %v764 = vunpack.c.l.b16 %v745
    %v765 = vunpack.c.l.b16 %v746
    %v766 = vpack.c.b16 %v761, %v760
    %v767 = vpack.c.b16 %v763, %v762
    %v768 = vpack.c.b16 %v765, %v764
    %v773 = vsel %vm397, %v740, 0
    %775 = vmatprep.subr.bf16.mxu0 0
    %776 = vmatpush1.bf16.msra.mxu0 %v766
    %777 = vmatprep.subr.bf16.mxu0 0
    %778 = vmatpush1.bf16.msra.mxu0 %v767
    %779 = vmatprep.subr.bf16.mxu0 0
    %780 = vmatpush1.bf16.msra.mxu0 %v768
    %781 = vmatprep.subr.bf16.mxu0 0
    %782 = vmatpush1.bf16.msra.mxu0 0
    %783 = vmatprep.subr.bf16.mxu0 0
    %784 = vmatpush1.bf16.msra.mxu0 0
    %785 = vmatprep.subr.bf16.mxu0 0
    %786 = vmatpush1.bf16.msra.mxu0 0
    %787 = vmatprep.subr.bf16.mxu0 0
    %788 = vmatpush1.bf16.msra.mxu0 0
    %789 = vmatprep.subr.bf16.mxu0 0
    %790 = vmatpush1.bf16.msra.mxu0 0
    %791 = vmatprep.subr.bf16.mxu0 0
    %792 = vmatpush1.bf16.msra.mxu0 0
    %793 = vmatprep.subr.bf16.mxu0 0
    %794 = vmatpush1.bf16.msra.mxu0 0
    %795 = vmatprep.subr.bf16.mxu0 0
    %796 = vmatpush1.bf16.msra.mxu0 0
    %797 = vmatprep.subr.bf16.mxu0 0
    %798 = vmatpush1.bf16.msra.mxu0 0
    %799 = vmatprep.subr.bf16.mxu0 0
    %800 = vmatpush1.bf16.msra.mxu0 0
    %801 = vmatprep.subr.bf16.mxu0 0
    %802 = vmatpush1.bf16.msra.mxu0 0
    %803 = vmatprep.subr.bf16.mxu0 0
    %804 = vmatpush1.bf16.msra.mxu0 0
    %805 = vmatprep.subr.bf16.mxu0 0
    %806 = vmatpush1.bf16.msra.mxu0 0
    %807 = vmatprep.mubr.bf16.mxu0 0
    %808 = vmatmul.mubr.bf16.gmra.mrb[0].mxu0 %v773
    %v809 = vpop.f32.mrb[0].mxu0
    %v810 = vadd.f32 %v752, %v809
    %v811 = vpop.f32.mrb[0].mxu0
    %v812 = vpop.f32.mrb[0].mxu0
    %v813 = vpop.f32.mrb[0].mxu0
    %814 = vdwg.mxu0
    %v815 = vpack.c.bf16 %v810, %v810
    %v816 = vld [vmem:[%s10] sm:$0xf]
    %v817 = vld [vmem:[%s10 + $0x4] sm:$0xf]
    %v818 = vld [vmem:[%s10 + $0x8] sm:$0xf]
    %v819 = vld [vmem:[%s10 + $0xc] sm:$0xf]
    %v820 = vld [vmem:[%s10 + $0x10] sm:$0xf]
    %v821 = vld [vmem:[%s10 + $0x14] sm:$0xf]
    %v822 = vld [vmem:[%s11] sm:$0x1]
    %v824 = vlaneseq
    %v825 = vshrl.u32 %v824, 7
    %v826 = vsub.s32 0, %v825
    %v827 = vrot.slane %v822, %v826
    %v835 = vunpack.c.l.b16 %v816
    %v836 = vunpack.c.l.b16 %v817
    %v837 = vunpack.c.l.b16 %v818
    %v838 = vunpack.c.l.b16 %v819
    %v839 = vunpack.c.l.b16 %v820
    %v840 = vunpack.c.l.b16 %v821
    %v841 = vpack.c.b16 %v836, %v835
    %v842 = vpack.c.b16 %v838, %v837
    %v843 = vpack.c.b16 %v840, %v839
    %v848 = vsel %vm397, %v815, 0
    %850 = vmatprep.subr.bf16.mxu0 0
    %851 = vmatpush1.bf16.msra.mxu0 %v841
    %852 = vmatprep.subr.bf16.mxu0 0
    %853 = vmatpush1.bf16.msra.mxu0 %v842
    %854 = vmatprep.subr.bf16.mxu0 0
    %855 = vmatpush1.bf16.msra.mxu0 %v843
    %856 = vmatprep.subr.bf16.mxu0 0
    %857 = vmatpush1.bf16.msra.mxu0 0
    %858 = vmatprep.subr.bf16.mxu0 0
    %859 = vmatpush1.bf16.msra.mxu0 0
    %860 = vmatprep.subr.bf16.mxu0 0
    %861 = vmatpush1.bf16.msra.mxu0 0
    %862 = vmatprep.subr.bf16.mxu0 0
    %863 = vmatpush1.bf16.msra.mxu0 0
    %864 = vmatprep.subr.bf16.mxu0 0
    %865 = vmatpush1.bf16.msra.mxu0 0
    %866 = vmatprep.subr.bf16.mxu0 0
    %867 = vmatpush1.bf16.msra.mxu0 0
    %868 = vmatprep.subr.bf16.mxu0 0
    %869 = vmatpush1.bf16.msra.mxu0 0
    %870 = vmatprep.subr.bf16.mxu0 0
    %871 = vmatpush1.bf16.msra.mxu0 0
    %872 = vmatprep.subr.bf16.mxu0 0
    %873 = vmatpush1.bf16.msra.mxu0 0
    %874 = vmatprep.subr.bf16.mxu0 0
    %875 = vmatpush1.bf16.msra.mxu0 0
    %876 = vmatprep.subr.bf16.mxu0 0
    %877 = vmatpush1.bf16.msra.mxu0 0
    %878 = vmatprep.subr.bf16.mxu0 0
    %879 = vmatpush1.bf16.msra.mxu0 0
    %880 = vmatprep.subr.bf16.mxu0 0
    %881 = vmatpush1.bf16.msra.mxu0 0
    %882 = vmatprep.mubr.bf16.mxu0 0
    %883 = vmatmul.mubr.bf16.gmra.mrb[0].mxu0 %v848
    %v884 = vpop.f32.mrb[0].mxu0
    %v885 = vadd.f32 %v827, %v884
    %v886 = vpop.f32.mrb[0].mxu0
    %v887 = vpop.f32.mrb[0].mxu0
    %v888 = vpop.f32.mrb[0].mxu0
    %889 = vdwg.mxu0
    %890 = vst.msk [vmem:[#allocation15] sm:$0xff] %vm184, %v885
    // Predicated region
    $region70: #{tpu_custom_call.1} parent=1 // pred_check
      _
    $region71: #{tpu_custom_call.1} parent=1 // pred_check_branch
      %892 = sbr.rel (0) target = $region73
    $region72: #{tpu_custom_call.1} parent=1 // pred_region
      _
    $region73: #{tpu_custom_call.1} parent=1 // pred_fallthru
      _
    // Predicated region
    $region74: #{tpu_custom_call.1} parent=1 // pred_check
      _
    $region75: #{tpu_custom_call.1} parent=1 // pred_check_branch
      %894 = sbr.rel (0) target = $region77
    $region76: #{tpu_custom_call.1} parent=1 // pred_region
      %s896 = ssub.s32 128, 128
      %897 = vsyncadd [#allocation7], %s896
      %s899 = sshll.u32 [#allocation14], 4
      %s900 = int_to_ptr.vmem [resolvable:$true] %s899
      %902 = dma.vmem_to_hbm [thread:$0]  %s900, 128, %s13, [#allocation7]
    $region77: #{tpu_custom_call.1} parent=1 // pred_fallthru
      _
    // Predicated region
    $region78: #{tpu_custom_call.1} parent=1 // pred_check
      _
    $region79: #{tpu_custom_call.1} parent=1 // pred_check_branch
      %904 = sbr.rel (0) target = $region81
    $region80: #{tpu_custom_call.1} parent=1 // pred_region
      %s906 = ssub.s32 128, 128
      %907 = vsyncadd [#allocation16], %s906
      %s909 = sshll.u32 [#allocation15], 4
      %s910 = int_to_ptr.vmem [resolvable:$true] %s909
      %912 = dma.vmem_to_hbm [thread:$0]  %s910, 128, %s14, [#allocation16]
    $region81: #{tpu_custom_call.1} parent=1 // pred_fallthru
      _
    // Predicated region
    $region82: #{tpu_custom_call.1} parent=1 // pred_check
      _
    $region83: #{tpu_custom_call.1} parent=1 // pred_check_branch
      %914 = sbr.rel (0) target = $region85
    $region84: #{tpu_custom_call.1} parent=1 // pred_region
      _
    $region85: #{tpu_custom_call.1} parent=1 // pred_fallthru
      _
    // Predicated region
    $region86: #{tpu_custom_call.1} parent=1 // pred_check
      _
    $region87: #{tpu_custom_call.1} parent=1 // pred_check_branch
      %916 = sbr.rel (0) target = $region89
    $region88: #{tpu_custom_call.1} parent=1 // pred_region
      _
    $region89: #{tpu_custom_call.1} parent=1 // pred_fallthru
      _
    // Predicated region
    $region90: #{tpu_custom_call.1} parent=1 // pred_check
      _
    $region91: #{tpu_custom_call.1} parent=1 // pred_check_branch
      %918 = sbr.rel (0) target = $region93
    $region92: #{tpu_custom_call.1} parent=1 // pred_region
      %919 = dma.done [#allocation7], 128
    $region93: #{tpu_custom_call.1} parent=1 // pred_fallthru
      _
    // Predicated region
    $region94: #{tpu_custom_call.1} parent=1 // pred_check
      _
    $region95: #{tpu_custom_call.1} parent=1 // pred_check_branch
      %921 = sbr.rel (0) target = $region97
    $region96: #{tpu_custom_call.1} parent=1 // pred_region
      %922 = dma.done [#allocation16], 128
    $region97: #{tpu_custom_call.1} parent=1 // pred_fallthru
      _
    // Predicated region
    $region98: #{tpu_custom_call.1} parent=1 // pred_check
      _
    $region99: #{tpu_custom_call.1} parent=1 // pred_check_branch
      %924 = sbr.rel (0) target = $region101
    $region100: #{tpu_custom_call.1} parent=1 // pred_region
      _
    $region101: #{tpu_custom_call.1} parent=1 // pred_fallthru
      _
    %925 = vsyncpa [#allocation6], 1
    %926 = vsyncpa [#allocation9], 1
    %927 = vsyncpa [#allocation12], 1
    %928 = vsyncpa [#allocation7], 1
    %929 = vsyncpa [#allocation16], 1

</llo_original>
